<compile_context>
chip_gen: v6e
topology: v6e:2x2x1
jax: 0.10.0
libtpu: 0.0.40
codegen_flags: <defaults>
</compile_context>

<pallas_src>
import functools

import jax
import jax.numpy as jnp
from jax.experimental import pallas as pl
from jax.experimental.pallas import tpu as pltpu


def _res_conv_block_kernel(x_ref, w_ref, b_ref, gamma_ref, beta_ref, alpha_ref, o_ref,
                           *, ks, pad, gn, same_channels, out_len):
    """One batch element per grid step.

    x_ref:     (C_in, L + 2*pad)   zero-padded input slab
    w_ref:     (C_out, ks*C_in)    weight-standardized conv weight, im2col layout
    b_ref:     (C_out, 1)          conv bias
    gamma_ref: (C_out, 1)          GroupNorm scale
    beta_ref:  (C_out, 1)          GroupNorm shift
    alpha_ref: (1, 1)              PReLU slope (single shared parameter)
    o_ref:     (C_out, L)          output slab
    """
    xp = x_ref[...]                                   # (C_in, L_pad)
    c_out = o_ref.shape[0]
    L = out_len

    # --- Conv1d as one fused matmul (im2col along the sublane axis) -------------
    cols = [xp[:, k:k + L] for k in range(ks)]        # K shifted (C_in, L) views
    xcol = jnp.concatenate(cols, axis=0) if ks > 1 else cols[0]   # (ks*C_in, L)
    y = jnp.dot(w_ref[...], xcol,
                preferred_element_type=jnp.float32) + b_ref[...]  # (C_out, L)

    # --- GroupNorm(gn, C_out), eps = 1e-5 (PyTorch default) ---------------------
    cg = c_out // gn
    n = cg * L
    y3 = y.reshape(gn, cg, L)                         # split sublane dim only (lane kept)
    s = jnp.sum(y3, axis=1, keepdims=True)            # (gn, 1, L)
    s = jnp.sum(s, axis=2, keepdims=True)             # (gn, 1, 1)
    mean = s * (1.0 / n)
    cent = y3 - mean
    ss = jnp.sum(cent * cent, axis=1, keepdims=True)
    ss = jnp.sum(ss, axis=2, keepdims=True)
    inv_std = jax.lax.rsqrt(ss * (1.0 / n) + 1e-5)    # (gn, 1, 1)
    yn = (cent * inv_std).reshape(c_out, L)
    yn = yn * gamma_ref[...] + beta_ref[...]          # per-channel affine

    # --- PReLU (single shared slope) --------------------------------------------
    yp = jnp.where(yn > 0, yn, yn * alpha_ref[...])

    # --- Residual: (x + x1) / 2 when inc == outc --------------------------------
    if same_channels:
        yp = (cols[pad] + yp) * 0.5                   # cols[pad] is the unpadded x

    o_ref[...] = yp.astype(o_ref.dtype)


def residual_conv_block(x, params, *, kernel_size, stride=1, gn=8):
    """x: (B, C_in, L) float32. params: dict with
         w     (C_out, C_in, K)   conv weight (PyTorch layout)
         b     (C_out,)           conv bias
         gamma (C_out,)           GroupNorm weight
         beta  (C_out,)           GroupNorm bias
         alpha (1,)               PReLU parameter
    """
    B, C_in, L = x.shape
    w = params["w"]
    C_out, _, K = w.shape
    assert K == kernel_size and w.shape[1] == C_in
    assert C_out % gn == 0
    assert stride == 1  # TODO(synk): stride > 1 path not implemented (module default is 1)

    pad = (kernel_size - 1) // 2                      # get_padding(ks, dilation=1)
    same_channels = (C_in == C_out)

    # ---- Weight standardization (hoisted: pure function of the parameters) -----
    eps_w = 1e-5 if x.dtype == jnp.float32 else 1e-3
    w_mean = jnp.mean(w, axis=(1, 2), keepdims=True)
    w_var = jnp.var(w, axis=(1, 2), keepdims=True)    # biased (unbiased=False)
    w_n = (w - w_mean) * jax.lax.rsqrt(w_var + eps_w)
    # im2col layout: row block k holds W[:, :, k]  ->  (C_out, K*C_in)
    w2 = jnp.transpose(w_n, (0, 2, 1)).reshape(C_out, kernel_size * C_in)

    # ---- Zero padding of the spatial (lane) dim ---------------------------------
    x_pad = jnp.pad(x, ((0, 0), (0, 0), (pad, pad)))
    L_pad = L + 2 * pad

    b2 = params["b"].reshape(C_out, 1)
    gamma2 = params["gamma"].reshape(C_out, 1)
    beta2 = params["beta"].reshape(C_out, 1)
    alpha2 = params["alpha"].reshape(1, 1)

    kernel = functools.partial(
        _res_conv_block_kernel,
        ks=kernel_size, pad=pad, gn=gn, same_channels=same_channels, out_len=L)

    return pl.pallas_call(
        kernel,
        out_shape=jax.ShapeDtypeStruct((B, C_out, L), x.dtype),
        grid=(B,),
        in_specs=[
            pl.BlockSpec((None, C_in, L_pad), lambda b: (b, 0, 0)),          # x (batch squeezed)
            pl.BlockSpec((C_out, kernel_size * C_in), lambda b: (0, 0)),     # fused conv weight
            pl.BlockSpec((C_out, 1), lambda b: (0, 0)),                      # bias
            pl.BlockSpec((C_out, 1), lambda b: (0, 0)),                      # gamma
            pl.BlockSpec((C_out, 1), lambda b: (0, 0)),                      # beta
            pl.BlockSpec((1, 1), lambda b: (0, 0)),                          # PReLU alpha
        ],
        out_specs=pl.BlockSpec((None, C_out, L), lambda b: (b, 0, 0)),
        compiler_params=pltpu.CompilerParams(dimension_semantics=("parallel",)),
    )(x_pad, w2, b2, gamma2, beta2, alpha2)


def _reference(x, params, *, kernel_size, gn):
    """Pure-JAX reference mirroring the PyTorch forward."""
    w, b = params["w"], params["b"]
    C_out, C_in, K = w.shape
    eps_w = 1e-5 if x.dtype == jnp.float32 else 1e-3
    w_mean = jnp.mean(w, axis=(1, 2), keepdims=True)
    w_var = jnp.var(w, axis=(1, 2), keepdims=True)
    w_n = (w - w_mean) * jax.lax.rsqrt(w_var + eps_w)
    pad = (kernel_size - 1) // 2
    y = jax.lax.conv_general_dilated(
        x, w_n, window_strides=(1,), padding=[(pad, pad)],
        dimension_numbers=("NCH", "OIH", "NCH")) + b[None, :, None]
    B, C, L = y.shape
    y4 = y.reshape(B, gn, C // gn, L)
    m = jnp.mean(y4, axis=(2, 3), keepdims=True)
    v = jnp.var(y4, axis=(2, 3), keepdims=True)
    yn = (y4 - m) * jax.lax.rsqrt(v + 1e-5)
    yn = yn.reshape(B, C, L) * params["gamma"][None, :, None] + params["beta"][None, :, None]
    a = params["alpha"].reshape(())
    yp = jnp.where(yn > 0, yn, a * yn)
    if C_in == C_out:
        return (x + yp) / 2
    return yp


if __name__ == "__main__":
    key = jax.random.PRNGKey(0)
    k1, k2, kx1, kx2 = jax.random.split(key, 4)

    def make_params(k, inc, outc, ks):
        ks_ = jax.random.split(k, 4)
        bound = 1.0 / ((inc * ks) ** 0.5)
        return {
            "w": jax.random.uniform(ks_[0], (outc, inc, ks), jnp.float32, -bound, bound),
            "b": jax.random.uniform(ks_[1], (outc,), jnp.float32, -bound, bound),
            "gamma": 1.0 + 0.1 * jax.random.normal(ks_[2], (outc,), jnp.float32),
            "beta": 0.1 * jax.random.normal(ks_[3], (outc,), jnp.float32),
            "alpha": jnp.full((1,), 0.25, jnp.float32),   # PReLU default init
        }

    # Case 1: inc == outc -> residual path exercised.  L = 128 keeps stores lane-dense.
    p1 = make_params(k1, 32, 32, 3)
    x1 = jax.random.normal(kx1, (2, 32, 128), jnp.float32)
    out1 = jax.block_until_ready(residual_conv_block(x1, p1, kernel_size=3, gn=8))
    ref1 = _reference(x1, p1, kernel_size=3, gn=8)
    assert out1.shape == ref1.shape
    assert jnp.allclose(out1, ref1, atol=1e-4, rtol=1e-4), "case1 mismatch vs JAX reference"

    # Case 2: inc != outc -> no residual, larger kernel size.
    p2 = make_params(k2, 16, 32, 5)
    x2 = jax.random.normal(kx2, (2, 16, 128), jnp.float32)
    out2 = jax.block_until_ready(residual_conv_block(x2, p2, kernel_size=5, gn=8))
    ref2 = _reference(x2, p2, kernel_size=5, gn=8)
    assert out2.shape == ref2.shape
    assert jnp.allclose(out2, ref2, atol=1e-4, rtol=1e-4), "case2 mismatch vs JAX reference"

    print("KERNEL_OK")
</pallas_src>

<mosaic_0001>
module attributes {stable_mosaic.version = 11 : i64} {
  func.func @_res_conv_block_kernel(%arg0: i32, %arg1: memref<1x32x130xf32, #tpu.memory_space<vmem>>, %arg2: memref<32x96xf32, #tpu.memory_space<vmem>>, %arg3: memref<32x1xf32, #tpu.memory_space<vmem>>, %arg4: memref<32x1xf32, #tpu.memory_space<vmem>>, %arg5: memref<32x1xf32, #tpu.memory_space<vmem>>, %arg6: memref<1x1xf32, #tpu.memory_space<vmem>>, %arg7: memref<1x32x128xf32, #tpu.memory_space<vmem>>) attributes {dimension_semantics = [#tpu.dimension_semantics<parallel>], iteration_bounds = array<i64: 2>, scalar_prefetch = 0 : i64, scratch_operands = 0 : i64, tpu.core_type = #tpu.core_type<tc>, window_params = [{transform_indices = @transform_0, window_bounds = array<i64: 1, 32, 130>}, {pipeline_mode = #tpu.pipeline_mode<synchronous>, transform_indices = @transform_1, window_bounds = array<i64: 32, 96>}, {pipeline_mode = #tpu.pipeline_mode<synchronous>, transform_indices = @transform_2, window_bounds = array<i64: 32, 1>}, {pipeline_mode = #tpu.pipeline_mode<synchronous>, transform_indices = @transform_3, window_bounds = array<i64: 32, 1>}, {pipeline_mode = #tpu.pipeline_mode<synchronous>, transform_indices = @transform_4, window_bounds = array<i64: 32, 1>}, {pipeline_mode = #tpu.pipeline_mode<synchronous>, transform_indices = @transform_5, window_bounds = array<i64: 1, 1>}, {transform_indices = @transform_6, window_bounds = array<i64: 1, 32, 128>}]} {
    %c0 = arith.constant 0 : index
    %c0_0 = arith.constant 0 : index
    %c0_1 = arith.constant 0 : index
    %0 = vector.load %arg1[%c0, %c0_0, %c0_1] : memref<1x32x130xf32, #tpu.memory_space<vmem>>, vector<1x32x130xf32>
    %1 = vector.shape_cast %0 : vector<1x32x130xf32> to vector<32x130xf32>
    %2 = vector.extract_strided_slice %1 {offsets = [0, 0], sizes = [32, 128], strides = [1, 1]} : vector<32x130xf32> to vector<32x128xf32>
    %3 = vector.extract_strided_slice %1 {offsets = [0, 1], sizes = [32, 128], strides = [1, 1]} : vector<32x130xf32> to vector<32x128xf32>
    %4 = vector.extract_strided_slice %1 {offsets = [0, 2], sizes = [32, 128], strides = [1, 1]} : vector<32x130xf32> to vector<32x128xf32>
    %5 = tpu.concatenate %2, %3, %4 in 0 : vector<32x128xf32>, vector<32x128xf32>, vector<32x128xf32> -> vector<96x128xf32>
    %c0_2 = arith.constant 0 : index
    %c0_3 = arith.constant 0 : index
    %6 = vector.load %arg2[%c0_2, %c0_3] : memref<32x96xf32, #tpu.memory_space<vmem>>, vector<32x96xf32>
    %cst = arith.constant dense<0.000000e+00> : vector<32x128xf32>
    %7 = tpu.matmul %6, %5, %cst {dimension_numbers = #tpu.dot_dimension_numbers<[1], [0], [0], [1], [0, 0, 1, 1], [], []>} : vector<32x96xf32>, vector<96x128xf32>, vector<32x128xf32> -> vector<32x128xf32>
    %c0_4 = arith.constant 0 : index
    %c0_5 = arith.constant 0 : index
    %8 = vector.load %arg3[%c0_4, %c0_5] : memref<32x1xf32, #tpu.memory_space<vmem>>, vector<32x1xf32>
    %9 = vector.broadcast %8 : vector<32x1xf32> to vector<32x128xf32>
    %10 = arith.addf %7, %9 : vector<32x128xf32>
    %11 = vector.shape_cast %10 : vector<32x128xf32> to vector<8x4x128xf32>
    %cst_6 = arith.constant dense<0.000000e+00> : vector<8x128xf32>
    %12 = vector.multi_reduction <add>, %11, %cst_6 [1] : vector<8x4x128xf32> to vector<8x128xf32>
    %13 = vector.shape_cast %12 : vector<8x128xf32> to vector<8x1x128xf32>
    %cst_7 = arith.constant dense<0.000000e+00> : vector<8x1xf32>
    %14 = vector.multi_reduction <add>, %13, %cst_7 [2] : vector<8x1x128xf32> to vector<8x1xf32>
    %15 = vector.shape_cast %14 : vector<8x1xf32> to vector<8x1x1xf32>
    %cst_8 = arith.constant 0.001953125 : f32
    %16 = vector.broadcast %cst_8 : f32 to vector<8x1x1xf32>
    %17 = arith.mulf %15, %16 : vector<8x1x1xf32>
    %18 = vector.broadcast %17 : vector<8x1x1xf32> to vector<8x4x128xf32>
    %19 = arith.subf %11, %18 : vector<8x4x128xf32>
    %20 = arith.mulf %19, %19 : vector<8x4x128xf32>
    %cst_9 = arith.constant dense<0.000000e+00> : vector<8x128xf32>
    %21 = vector.multi_reduction <add>, %20, %cst_9 [1] : vector<8x4x128xf32> to vector<8x128xf32>
    %22 = vector.shape_cast %21 : vector<8x128xf32> to vector<8x1x128xf32>
    %cst_10 = arith.constant dense<0.000000e+00> : vector<8x1xf32>
    %23 = vector.multi_reduction <add>, %22, %cst_10 [2] : vector<8x1x128xf32> to vector<8x1xf32>
    %24 = vector.shape_cast %23 : vector<8x1xf32> to vector<8x1x1xf32>
    %cst_11 = arith.constant 0.001953125 : f32
    %25 = vector.broadcast %cst_11 : f32 to vector<8x1x1xf32>
    %26 = arith.mulf %24, %25 : vector<8x1x1xf32>
    %cst_12 = arith.constant 9.99999974E-6 : f32
    %27 = vector.broadcast %cst_12 : f32 to vector<8x1x1xf32>
    %28 = arith.addf %26, %27 : vector<8x1x1xf32>
    %29 = math.rsqrt %28 : vector<8x1x1xf32>
    %30 = vector.broadcast %29 : vector<8x1x1xf32> to vector<8x4x128xf32>
    %31 = arith.mulf %19, %30 : vector<8x4x128xf32>
    %32 = vector.shape_cast %31 : vector<8x4x128xf32> to vector<32x128xf32>
    %c0_13 = arith.constant 0 : index
    %c0_14 = arith.constant 0 : index
    %33 = vector.load %arg4[%c0_13, %c0_14] : memref<32x1xf32, #tpu.memory_space<vmem>>, vector<32x1xf32>
    %34 = vector.broadcast %33 : vector<32x1xf32> to vector<32x128xf32>
    %35 = arith.mulf %32, %34 : vector<32x128xf32>
    %c0_15 = arith.constant 0 : index
    %c0_16 = arith.constant 0 : index
    %36 = vector.load %arg5[%c0_15, %c0_16] : memref<32x1xf32, #tpu.memory_space<vmem>>, vector<32x1xf32>
    %37 = vector.broadcast %36 : vector<32x1xf32> to vector<32x128xf32>
    %38 = arith.addf %35, %37 : vector<32x128xf32>
    %cst_17 = arith.constant 0.000000e+00 : f32
    %39 = vector.broadcast %cst_17 : f32 to vector<32x128xf32>
    %40 = arith.cmpf ogt, %38, %39 : vector<32x128xf32>
    %c0_18 = arith.constant 0 : index
    %c0_19 = arith.constant 0 : index
    %41 = vector.load %arg6[%c0_18, %c0_19] : memref<1x1xf32, #tpu.memory_space<vmem>>, vector<1x1xf32>
    %42 = vector.broadcast %41 : vector<1x1xf32> to vector<32x128xf32>
    %43 = arith.mulf %38, %42 : vector<32x128xf32>
    %44 = arith.select %40, %38, %43 : vector<32x128xi1>, vector<32x128xf32>
    %45 = arith.addf %3, %44 : vector<32x128xf32>
    %cst_20 = arith.constant 5.000000e-01 : f32
    %46 = vector.broadcast %cst_20 : f32 to vector<32x128xf32>
    %47 = arith.mulf %45, %46 : vector<32x128xf32>
    %c0_21 = arith.constant 0 : index
    %c0_22 = arith.constant 0 : index
    %c0_23 = arith.constant 0 : index
    %48 = vector.load %arg7[%c0_21, %c0_22, %c0_23] : memref<1x32x128xf32, #tpu.memory_space<vmem>>, vector<1x32x128xf32>
    %49 = vector.shape_cast %48 : vector<1x32x128xf32> to vector<32x128xf32>
    %50 = vector.shape_cast %47 : vector<32x128xf32> to vector<1x32x128xf32>
    tpu.vector_store %arg7[%c0_21, %c0_22, %c0_23], %50 {strides = array<i32>} : memref<1x32x128xf32, #tpu.memory_space<vmem>>, vector<1x32x128xf32>,
    return
  }
  func.func @transform_0(%arg0: i32) -> (i32, i32, i32) {
    %c0_i32 = arith.constant 0 : i32
    %c0_i32_0 = arith.constant 0 : i32
    %c0_i32_1 = arith.constant 0 : i32
    return %arg0, %c0_i32, %c0_i32_0 : i32, i32, i32
  }
  func.func @transform_1(%arg0: i32) -> (i32, i32) {
    %c0_i32 = arith.constant 0 : i32
    %c0_i32_0 = arith.constant 0 : i32
    %c0_i32_1 = arith.constant 0 : i32
    return %c0_i32, %c0_i32_0 : i32, i32
  }
  func.func @transform_2(%arg0: i32) -> (i32, i32) {
    %c0_i32 = arith.constant 0 : i32
    %c0_i32_0 = arith.constant 0 : i32
    %c0_i32_1 = arith.constant 0 : i32
    return %c0_i32, %c0_i32_0 : i32, i32
  }
  func.func @transform_3(%arg0: i32) -> (i32, i32) {
    %c0_i32 = arith.constant 0 : i32
    %c0_i32_0 = arith.constant 0 : i32
    %c0_i32_1 = arith.constant 0 : i32
    return %c0_i32, %c0_i32_0 : i32, i32
  }
  func.func @transform_4(%arg0: i32) -> (i32, i32) {
    %c0_i32 = arith.constant 0 : i32
    %c0_i32_0 = arith.constant 0 : i32
    %c0_i32_1 = arith.constant 0 : i32
    return %c0_i32, %c0_i32_0 : i32, i32
  }
  func.func @transform_5(%arg0: i32) -> (i32, i32) {
    %c0_i32 = arith.constant 0 : i32
    %c0_i32_0 = arith.constant 0 : i32
    %c0_i32_1 = arith.constant 0 : i32
    return %c0_i32, %c0_i32_0 : i32, i32
  }
  func.func @transform_6(%arg0: i32) -> (i32, i32, i32) {
    %c0_i32 = arith.constant 0 : i32
    %c0_i32_0 = arith.constant 0 : i32
    %c0_i32_1 = arith.constant 0 : i32
    return %arg0, %c0_i32, %c0_i32_0 : i32, i32, i32
  }
}

</mosaic_0001>

<llo_original>
// kernel: tpu_custom_call.1
$region0: #{tpu_custom_call.1}
  #allocation0 [shape = 'u32[]', space=smem, size = 0x4, offset = 0x4, fixed_abs, tag = 'smem constant byte address 0x4 - core index']
  #allocation1 [shape = 'u32[144,128]{1,0:T(1,128)}', space=vmem, size = 0x12000, scoped, tag = 'internal scratch']
  #allocation2 [shape = 'f32[1,1]{1,0:T(1,128)S(1)}', space=vmem, size = 0x200, scoped, tag = 'scoped memory for tpu_custom_call.1']
  %s0 = inlined_call_operand.hbm [shape: f32[2,32,130], index: 0, kind: input, shape index: {}]
  %s1 = inlined_call_operand.vmem [shape: f32[32,96], index: 1, kind: input, shape index: {}]
  %s2 = inlined_call_operand.vmem [shape: f32[32,1], index: 2, kind: input, shape index: {}]
  %s3 = inlined_call_operand.vmem [shape: f32[32,1], index: 3, kind: input, shape index: {}]
  %s4 = inlined_call_operand.vmem [shape: f32[32,1], index: 4, kind: input, shape index: {}]
  %s5 = inlined_call_operand.<no memory space> [shape: f32[1,1], index: 5, kind: input, shape index: {}]
  %s6 = inlined_call_operand.hbm [shape: f32[2,32,128], index: 6, kind: output, shape index: {}]
  %s7 = sld [smem:[#allocation0]]
  $region61: #{tpu_custom_call.1} parent=0
    _
  %s9 = ssub.s32 1, %s7
  %s10 = scalar_select 0, %s9, %s7
  %v11 = vstv %s5
  %12 = vst [vmem:[#allocation2] sm:$0x1] %v11
  $region1: #{tpu_custom_call.1} parent=0
    #allocation3 [shape = 'u8[65536]{0}', space=vmem, size = 0x10000, scoped, tag = 'input window, operand 0']
    #allocation4 [shape = 's32[2]{0}', space=sflag, size = 0x8, scoped, tag = 'scoped memory for tpu_custom_call.1']
    #allocation5 [shape = 's32[2]{0}', space=sflag, size = 0x8, scoped, tag = 'scoped memory for tpu_custom_call.1']
    #allocation6 [shape = 'u8[32768]{0}', space=vmem, size = 0x8000, scoped, tag = 'output window, operand 0']
    %13 = vsyncpa [#allocation4], 0
    %s14 = scalar_lea.sflag [#allocation4], 1
    %15 = vsyncpa %s14, 0
    %16 = vsyncpa [#allocation5], 0
    %s17 = scalar_lea.sflag [#allocation5], 1
    %18 = vsyncpa %s17, 0
    loop: start=0, step=1, limit=4
    $region2: #{tpu_custom_call.1} parent=1 // loop_pre_header
      _
    $region3: #{tpu_custom_call.1} parent=1 // loop_header
      %s20 = sphi 0, %s24
      %p21 = scmp.ge.s32.totalorder %s20, 4
      %s30 = sphi 0, %s32
      %s33 = sphi 0, %s30
      %s34 = sphi 0, %s33
      %s50 = sphi 0, %s34
      %s54 = sphi 0, %s54
      %s56 = sphi 0, %s54
      %s57 = sphi 0, %s56
      %s71 = sphi 0, %s57
      %s75 = sphi 0, %s75
      %s77 = sphi 0, %s75
      %s78 = sphi 0, %s77
      %s92 = sphi 0, %s78
      %s96 = sphi 0, %s96
      %s98 = sphi 0, %s96
      %s99 = sphi 0, %s98
      %s113 = sphi 0, %s99
      %s117 = sphi 0, %s117
      %s119 = sphi 0, %s117
      %s120 = sphi 0, %s119
      %s134 = sphi 0, %s120
      %s138 = sphi 0, %s138
      %s140 = sphi 0, %s138
      %s141 = sphi 0, %s140
      %s155 = sphi 0, %s141
      %s161 = sphi 0, %s163
      %s164 = sphi 0, %s161
      %s165 = sphi 0, %s164
      %s181 = sphi 0, %s165
    $region4: #{tpu_custom_call.1} parent=1 // loop_header_branch
      %23 = sbr.rel (%p21) target = $region8
    $region5: #{tpu_custom_call.1} parent=1 // loop_body
      %s25 = ssub.s32 %s20, 1
      %s26 = ssub.s32 %s20, 2
      %s27 = sadd.s32 %s20, 1
      %s28 = ssub.s32 %s20, %s27
      %p29 = scmp.eq.s32.totalorder %s28, 0
      %s31 = sadd.s32 %s30, 1
      %s32 = scalar_select %p29, %s30, %s31
      %p35 = pneg %p29
      %p36 = scmp.eq.s32.totalorder %s20, 1
      %p37 = por %p35, %p36
      %p38 = scmp.ne.s32.totalorder %s30, %s33
      %p39 = scmp.eq.s32.totalorder %s20, 0
      %p40 = por %p38, %p39
      %p41 = scmp.ne.s32.totalorder %s30, %s33
      %p42 = scmp.eq.s32.totalorder %s25, 1
      %p43 = por %p41, %p42
      %p44 = scmp.ne.s32.totalorder %s33, %s34
      %p45 = scmp.eq.s32.totalorder %s25, 0
      %p46 = por %p44, %p45
      %p47 = scmp.ne.s32.totalorder %s33, %s34
      %p48 = scmp.eq.s32.totalorder %s26, 1
      %p49 = por %p47, %p48
      %p51 = scmp.ne.s32.totalorder %s34, %s50
      %p52 = scmp.eq.s32.totalorder %s26, 0
      %p53 = por %p51, %p52
      %s55 = sadd.s32 %s54, 1
      %p58 = scmp.eq.s32.totalorder %s20, 1
      %p59 = scmp.ne.s32.totalorder %s54, %s56
      %p60 = scmp.eq.s32.totalorder %s20, 0
      %p61 = por %p59, %p60
      %p62 = scmp.ne.s32.totalorder %s54, %s56
      %p63 = scmp.eq.s32.totalorder %s25, 1
      %p64 = por %p62, %p63
      %p65 = scmp.ne.s32.totalorder %s56, %s57
      %p66 = scmp.eq.s32.totalorder %s25, 0
      %p67 = por %p65, %p66
      %p68 = scmp.ne.s32.totalorder %s56, %s57
      %p69 = scmp.eq.s32.totalorder %s26, 1
      %p70 = por %p68, %p69
      %p72 = scmp.ne.s32.totalorder %s57, %s71
      %p73 = scmp.eq.s32.totalorder %s26, 0
      %p74 = por %p72, %p73
      %s76 = sadd.s32 %s75, 1
      %p79 = scmp.eq.s32.totalorder %s20, 1
      %p80 = scmp.ne.s32.totalorder %s75, %s77
      %p81 = scmp.eq.s32.totalorder %s20, 0
      %p82 = por %p80, %p81
      %p83 = scmp.ne.s32.totalorder %s75, %s77
      %p84 = scmp.eq.s32.totalorder %s25, 1
      %p85 = por %p83, %p84
      %p86 = scmp.ne.s32.totalorder %s77, %s78
      %p87 = scmp.eq.s32.totalorder %s25, 0
      %p88 = por %p86, %p87
      %p89 = scmp.ne.s32.totalorder %s77, %s78
      %p90 = scmp.eq.s32.totalorder %s26, 1
      %p91 = por %p89, %p90
      %p93 = scmp.ne.s32.totalorder %s78, %s92
      %p94 = scmp.eq.s32.totalorder %s26, 0
      %p95 = por %p93, %p94
      %s97 = sadd.s32 %s96, 1
      %p100 = scmp.eq.s32.totalorder %s20, 1
      %p101 = scmp.ne.s32.totalorder %s96, %s98
      %p102 = scmp.eq.s32.totalorder %s20, 0
      %p103 = por %p101, %p102
      %p104 = scmp.ne.s32.totalorder %s96, %s98
      %p105 = scmp.eq.s32.totalorder %s25, 1
      %p106 = por %p104, %p105
      %p107 = scmp.ne.s32.totalorder %s98, %s99
      %p108 = scmp.eq.s32.totalorder %s25, 0
      %p109 = por %p107, %p108
      %p110 = scmp.ne.s32.totalorder %s98, %s99
      %p111 = scmp.eq.s32.totalorder %s26, 1
      %p112 = por %p110, %p111
      %p114 = scmp.ne.s32.totalorder %s99, %s113
      %p115 = scmp.eq.s32.totalorder %s26, 0
      %p116 = por %p114, %p115
      %s118 = sadd.s32 %s117, 1
      %p121 = scmp.eq.s32.totalorder %s20, 1
      %p122 = scmp.ne.s32.totalorder %s117, %s119
      %p123 = scmp.eq.s32.totalorder %s20, 0
      %p124 = por %p122, %p123
      %p125 = scmp.ne.s32.totalorder %s117, %s119
      %p126 = scmp.eq.s32.totalorder %s25, 1
      %p127 = por %p125, %p126
      %p128 = scmp.ne.s32.totalorder %s119, %s120
      %p129 = scmp.eq.s32.totalorder %s25, 0
      %p130 = por %p128, %p129
      %p131 = scmp.ne.s32.totalorder %s119, %s120
      %p132 = scmp.eq.s32.totalorder %s26, 1
      %p133 = por %p131, %p132
      %p135 = scmp.ne.s32.totalorder %s120, %s134
      %p136 = scmp.eq.s32.totalorder %s26, 0
      %p137 = por %p135, %p136
      %s139 = sadd.s32 %s138, 1
      %p142 = scmp.eq.s32.totalorder %s20, 1
      %p143 = scmp.ne.s32.totalorder %s138, %s140
      %p144 = scmp.eq.s32.totalorder %s20, 0
      %p145 = por %p143, %p144
      %p146 = scmp.ne.s32.totalorder %s138, %s140
      %p147 = scmp.eq.s32.totalorder %s25, 1
      %p148 = por %p146, %p147
      %p149 = scmp.ne.s32.totalorder %s140, %s141
      %p150 = scmp.eq.s32.totalorder %s25, 0
      %p151 = por %p149, %p150
      %p152 = scmp.ne.s32.totalorder %s140, %s141
      %p153 = scmp.eq.s32.totalorder %s26, 1
      %p154 = por %p152, %p153
      %p156 = scmp.ne.s32.totalorder %s141, %s155
      %p157 = scmp.eq.s32.totalorder %s26, 0
      %p158 = por %p156, %p157
      %s159 = ssub.s32 %s20, %s27
      %p160 = scmp.eq.s32.totalorder %s159, 0
      %s162 = sadd.s32 %s161, 1
      %s163 = scalar_select %p160, %s161, %s162
      %p166 = pneg %p160
      %p167 = scmp.eq.s32.totalorder %s20, 1
      %p168 = por %p166, %p167
      %p169 = scmp.ne.s32.totalorder %s161, %s164
      %p170 = scmp.eq.s32.totalorder %s20, 0
      %p171 = por %p169, %p170
      %p172 = scmp.ne.s32.totalorder %s161, %s164
      %p173 = scmp.eq.s32.totalorder %s25, 1
      %p174 = por %p172, %p173
      %p175 = scmp.ne.s32.totalorder %s164, %s165
      %p176 = scmp.eq.s32.totalorder %s25, 0
      %p177 = por %p175, %p176
      %p178 = scmp.ne.s32.totalorder %s164, %s165
      %p179 = scmp.eq.s32.totalorder %s26, 1
      %p180 = por %p178, %p179
      %p182 = scmp.ne.s32.totalorder %s165, %s181
      %p183 = scmp.eq.s32.totalorder %s26, 0
      %p184 = por %p182, %p183
      %p185 = scmp.le.s32.totalorder 1, %s20
      %p186 = scmp.lt.s32.totalorder %s20, 3
      %p187 = pnand %p185, %p186
      %p188 = pneg %p187
      // Predicated region
      $region9: #{tpu_custom_call.1} parent=5 // pred_check
        _
      $region10: #{tpu_custom_call.1} parent=5 // pred_check_branch
        %190 = sbr.rel (%p187) target = $region12
      $region11: #{tpu_custom_call.1} parent=5 // pred_region
        %s191 = ssub.s32 %s20, 1
        // Predicated region
        $region13: #{tpu_custom_call.1} parent=11 // pred_check
          %p192 = pneg %p67
        $region14: #{tpu_custom_call.1} parent=11 // pred_check_branch
          %194 = sbr.rel (%p192) target = $region16
        $region15: #{tpu_custom_call.1} parent=11 // pred_region
          _
        $region16: #{tpu_custom_call.1} parent=11 // pred_fallthru
          _
        // Predicated region
        $region17: #{tpu_custom_call.1} parent=11 // pred_check
          %p195 = pneg %p88
        $region18: #{tpu_custom_call.1} parent=11 // pred_check_branch
          %197 = sbr.rel (%p195) target = $region20
        $region19: #{tpu_custom_call.1} parent=11 // pred_region
          _
        $region20: #{tpu_custom_call.1} parent=11 // pred_fallthru
          _
        // Predicated region
        $region21: #{tpu_custom_call.1} parent=11 // pred_check
          %p198 = pneg %p109
        $region22: #{tpu_custom_call.1} parent=11 // pred_check_branch
          %200 = sbr.rel (%p198) target = $region24
        $region23: #{tpu_custom_call.1} parent=11 // pred_region
          _
        $region24: #{tpu_custom_call.1} parent=11 // pred_fallthru
          _
        // Predicated region
        $region25: #{tpu_custom_call.1} parent=11 // pred_check
          %p201 = pneg %p130
        $region26: #{tpu_custom_call.1} parent=11 // pred_check_branch
          %203 = sbr.rel (%p201) target = $region28
        $region27: #{tpu_custom_call.1} parent=11 // pred_region
          _
        $region28: #{tpu_custom_call.1} parent=11 // pred_fallthru
          _
        // Predicated region
        $region29: #{tpu_custom_call.1} parent=11 // pred_check
          %p204 = pneg %p151
        $region30: #{tpu_custom_call.1} parent=11 // pred_check_branch
          %206 = sbr.rel (%p204) target = $region32
        $region31: #{tpu_custom_call.1} parent=11 // pred_region
          _
        $region32: #{tpu_custom_call.1} parent=11 // pred_fallthru
          _
      $region12: #{tpu_custom_call.1} parent=5 // pred_fallthru
        _
      %p207 = scmp.lt.s32.totalorder %s20, 2
      // Predicated region
      $region33: #{tpu_custom_call.1} parent=5 // pred_check
        %p208 = pneg %p207
      $region34: #{tpu_custom_call.1} parent=5 // pred_check_branch
        %210 = sbr.rel (%p208) target = $region36
      $region35: #{tpu_custom_call.1} parent=5 // pred_region
        // Predicated region
        $region37: #{tpu_custom_call.1} parent=35 // pred_check
          %p211 = pneg %p40
        $region38: #{tpu_custom_call.1} parent=35 // pred_check_branch
          %213 = sbr.rel (%p211) target = $region40
        $region39: #{tpu_custom_call.1} parent=35 // pred_region
          %s214 = sand.u32 %s30, 1
          %s215 = scalar_lea.sflag [#allocation4], %s214
          %s216 = sand.u32 %s30, 1
          %s217 = smul.addr %s216, 64
          %s218 = scalar_lea.vmem [#allocation3], %s217
          %s220 = ssub.s32 1024, 1024
          %221 = vsyncadd %s215, %s220
          %s222 = smul.addr %s20, 8
          %s223 = smul.addr %s222, 128
          %s224 = scalar_lea.hbm %s0, %s223
          %s225 = sshll.u32 %s218, 4
          %s226 = int_to_ptr.vmem [resolvable:$true] %s225
          %231 = dma.hbm_to_vmem [thread:$0]  %s224, 1024, %s226, %s215, 256, 256, 16
        $region40: #{tpu_custom_call.1} parent=35 // pred_fallthru
          _
      $region36: #{tpu_custom_call.1} parent=5 // pred_fallthru
        _
      %p232 = scmp.le.s32.totalorder 1, %s20
      %p233 = scmp.lt.s32.totalorder %s20, 3
      %p234 = pnand %p232, %p233
      %p235 = pneg %p234
      // Predicated region
      $region41: #{tpu_custom_call.1} parent=5 // pred_check
        _
      $region42: #{tpu_custom_call.1} parent=5 // pred_check_branch
        %237 = sbr.rel (%p234) target = $region44
      $region43: #{tpu_custom_call.1} parent=5 // pred_region
        %s238 = ssub.s32 %s20, 1
        %s239 = sand.u32 %s33, 1
        %s240 = scalar_lea.sflag [#allocation4], %s239
        %s241 = sand.u32 %s33, 1
        %s242 = smul.addr %s241, 64
        %s243 = scalar_lea.vmem [#allocation3], %s242
        // Predicated region
        $region45: #{tpu_custom_call.1} parent=43 // pred_check
          %p244 = pneg %p46
        $region46: #{tpu_custom_call.1} parent=43 // pred_check_branch
          %246 = sbr.rel (%p244) target = $region48
        $region47: #{tpu_custom_call.1} parent=43 // pred_region
          %247 = dma.done %s240, 1024
        $region48: #{tpu_custom_call.1} parent=43 // pred_fallthru
          _
        %s248 = sand.u32 %s33, 1
        %s249 = scalar_lea.sflag [#allocation4], %s248
        %s250 = sand.u32 %s33, 1
        %s251 = smul.addr %s250, 64
        %s252 = scalar_lea.vmem [#allocation3], %s251
        %p253 = pneg %p46
        %p254 = pneg %p43
        %p255 = pneg %p67
        %p256 = pneg %p64
        %p257 = pneg %p88
        %p258 = pneg %p85
        %p259 = pneg %p109
        %p260 = pneg %p106
        %p261 = pneg %p130
        %p262 = pneg %p127
        %p263 = pneg %p151
        %p264 = pneg %p148
        %p265 = pneg %p177
        %p266 = pneg %p174
        %s267 = sand.u32 %s164, 1
        %s268 = scalar_lea.sflag [#allocation5], %s267
        %s269 = sand.u32 %s164, 1
        %s270 = smul.addr %s269, 32
        %s271 = scalar_lea.vmem [#allocation6], %s270
        %v272 = vld [vmem:[%s243] sm:$0xff]
        %v273 = vld [vmem:[%s243 + $0x8] sm:$0xff]
        %v274 = vld [vmem:[%s243 + $0x10] sm:$0xff]
        %v275 = vld [vmem:[%s243 + $0x18] sm:$0xff]
        %v276 = vld [vmem:[%s243 + $0x20] sm:$0xff]
        %v277 = vld [vmem:[%s243 + $0x28] sm:$0xff]
        %v278 = vld [vmem:[%s243 + $0x30] sm:$0xff]
        %v279 = vld [vmem:[%s243 + $0x38] sm:$0xff]
        %288 = vrot.lane.b32.xlu0 %v272, 127
        %v289 = vpop.permute.xlu0 %288
        %290 = vrot.lane.b32.xlu0 %v273, 127
        %v291 = vpop.permute.xlu0 %290
        %292 = vrot.lane.b32.xlu0 %v274, 127
        %v293 = vpop.permute.xlu0 %292
        %294 = vrot.lane.b32.xlu0 %v275, 127
        %v295 = vpop.permute.xlu0 %294
        %296 = vrot.lane.b32.xlu0 %v276, 127
        %v297 = vpop.permute.xlu0 %296
        %298 = vrot.lane.b32.xlu0 %v277, 127
        %v299 = vpop.permute.xlu0 %298
        %300 = vrot.lane.b32.xlu0 %v278, 127
        %v301 = vpop.permute.xlu0 %300
        %302 = vrot.lane.b32.xlu0 %v279, 127
        %v303 = vpop.permute.xlu0 %302
        %vm304 = vcmask 1039360
        %v305 = vsel %vm304, %v289, %v291
        %v306 = vsel %vm304, %v293, %v295
        %v307 = vsel %vm304, %v297, %v299
        %v308 = vsel %vm304, %v301, %v303
        %313 = vrot.lane.b32.xlu0 %v272, 126
        %v314 = vpop.permute.xlu0 %313
        %315 = vrot.lane.b32.xlu0 %v273, 126
        %v316 = vpop.permute.xlu0 %315
        %317 = vrot.lane.b32.xlu0 %v274, 126
        %v318 = vpop.permute.xlu0 %317
        %319 = vrot.lane.b32.xlu0 %v275, 126
        %v320 = vpop.permute.xlu0 %319
        %321 = vrot.lane.b32.xlu0 %v276, 126
        %v322 = vpop.permute.xlu0 %321
        %323 = vrot.lane.b32.xlu0 %v277, 126
        %v324 = vpop.permute.xlu0 %323
        %325 = vrot.lane.b32.xlu0 %v278, 126
        %v326 = vpop.permute.xlu0 %325
        %327 = vrot.lane.b32.xlu0 %v279, 126
        %v328 = vpop.permute.xlu0 %327
        %vm329 = vcmask 1031168
        %v330 = vsel %vm329, %v314, %v316
        %v331 = vsel %vm329, %v318, %v320
        %v332 = vsel %vm329, %v322, %v324
        %v333 = vsel %vm329, %v326, %v328
        %v338 = vld [vmem:[%s1] sm:$0xff]
        %v339 = vld [vmem:[%s1 + $0x8] sm:$0xff]
        %v340 = vld [vmem:[%s1 + $0x10] sm:$0xff]
        %v341 = vld [vmem:[%s1 + $0x18] sm:$0xff]
        %v342 = vld [vmem:[%s2] sm:$0xff]
        %v343 = vld [vmem:[%s2 + $0x8] sm:$0xff]
        %v344 = vld [vmem:[%s2 + $0x10] sm:$0xff]
        %v345 = vld [vmem:[%s2 + $0x18] sm:$0xff]
        %347 = vset.pattern.permute.xlu0 0
        %348 = vperm.xlu0 %347, %v342
        %v349 = vpop.permute.xlu0 %348
        %352 = vset.pattern.permute.xlu0 0
        %353 = vperm.xlu0 %352, %v343
        %v354 = vpop.permute.xlu0 %353
        %357 = vset.pattern.permute.xlu0 0
        %358 = vperm.xlu0 %357, %v344
        %v359 = vpop.permute.xlu0 %358
        %362 = vset.pattern.permute.xlu0 0
        %363 = vperm.xlu0 %362, %v345
        %v364 = vpop.permute.xlu0 %363
        %vm366 = vcmask 785408
        %v368 = vsel %vm366, %v338, 0
        %v371 = vsel %vm366, %v339, 0
        %v374 = vsel %vm366, %v340, 0
        %v377 = vsel %vm366, %v341, 0
        %379 = vmatprep.subr.mxu0 0.0
        %380 = vmatpush1.msra.mxu0 0.0
        %381 = vmatprep.subr.mxu0 0.0
        %382 = vmatpush1.msra.mxu0 0.0
        %383 = vmatprep.subr.mxu0 0.0
        %384 = vmatpush1.msra.mxu0 0.0
        %385 = vmatprep.subr.mxu0 0.0
        %386 = vmatpush1.msra.mxu0 0.0
        %387 = vmatprep.subr.mxu0 0.0
        %388 = vmatpush1.msra.mxu0 %v333
        %389 = vmatprep.subr.mxu0 0.0
        %390 = vmatpush1.msra.mxu0 %v332
        %391 = vmatprep.subr.mxu0 0.0
        %392 = vmatpush1.msra.mxu0 %v331
        %393 = vmatprep.subr.mxu0 0.0
        %394 = vmatpush1.msra.mxu0 %v330
        %395 = vmatprep.subr.mxu0 0.0
        %396 = vmatpush1.msra.mxu0 %v308
        %397 = vmatprep.subr.mxu0 0.0
        %398 = vmatpush1.msra.mxu0 %v307
        %399 = vmatprep.subr.mxu0 0.0
        %400 = vmatpush1.msra.mxu0 %v306
        %401 = vmatprep.subr.mxu0 0.0
        %402 = vmatpush1.msra.mxu0 %v305
        %403 = vmatprep.subr.mxu0 0.0
        %404 = vmatpush1.msra.mxu0 %v278
        %405 = vmatprep.subr.mxu0 0.0
        %406 = vmatpush1.msra.mxu0 %v276
        %407 = vmatprep.subr.mxu0 0.0
        %408 = vmatpush1.msra.mxu0 %v274
        %409 = vmatprep.subr.mxu0 0.0
        %410 = vmatpush1.msra.mxu0 %v272
        %411 = vmatprep.subr.mxu0 0.0
        %412 = vmatpush2.msra.mxu0 0.0
        %413 = vmatprep.subr.mxu0 0.0
        %414 = vmatpush2.msra.mxu0 0.0
        %415 = vmatprep.subr.mxu0 0.0
        %416 = vmatpush2.msra.mxu0 0.0
        %417 = vmatprep.subr.mxu0 0.0
        %418 = vmatpush2.msra.mxu0 0.0
        %419 = vmatprep.subr.mxu0 0.0
        %420 = vmatpush2.msra.mxu0 0.0
        %421 = vmatprep.subr.mxu0 0.0
        %422 = vmatpush2.msra.mxu0 0.0
        %423 = vmatprep.subr.mxu0 0.0
        %424 = vmatpush2.msra.mxu0 0.0
        %425 = vmatprep.subr.mxu0 0.0
        %426 = vmatpush2.msra.mxu0 0.0
        %427 = vmatprep.subr.mxu0 0.0
        %428 = vmatpush2.msra.mxu0 0.0
        %429 = vmatprep.subr.mxu0 0.0
        %430 = vmatpush2.msra.mxu0 0.0
        %431 = vmatprep.subr.mxu0 0.0
        %432 = vmatpush2.msra.mxu0 0.0
        %433 = vmatprep.subr.mxu0 0.0
        %434 = vmatpush2.msra.mxu0 0.0
        %435 = vmatprep.subr.mxu0 0.0
        %436 = vmatpush2.msra.mxu0 0.0
        %437 = vmatprep.subr.mxu0 0.0
        %438 = vmatpush2.msra.mxu0 0.0
        %439 = vmatprep.subr.mxu0 0.0
        %440 = vmatpush2.msra.mxu0 0.0
        %441 = vmatprep.subr.mxu0 0.0
        %442 = vmatpush2.msra.mxu0 0.0
        %443 = vmatprep.mubr.f32.mxu0 0.0
        %444 = vmatmul.mubr.f32.gmra.mxu0 %v368
        %v445 = vpop.f32.mrf.mxu0
        %v446 = vadd.f32 %v349, %v445
        %v447 = vpop.f32.mrf.mxu0
        %448 = vmatprep.mubr.f32.mxu0 0.0
        %449 = vmatmul.mubr.f32.gmra.mxu0 %v371
        %v450 = vpop.f32.mrf.mxu0
        %v451 = vadd.f32 %v354, %v450
        %v452 = vpop.f32.mrf.mxu0
        %453 = vmatprep.mubr.f32.mxu0 0.0
        %454 = vmatmul.mubr.f32.gmra.mxu0 %v374
        %v455 = vpop.f32.mrf.mxu0
        %v456 = vadd.f32 %v359, %v455
        %v457 = vpop.f32.mrf.mxu0
        %458 = vmatprep.mubr.f32.mxu0 0.0
        %459 = vmatmul.mubr.f32.gmra.mxu0 %v377
        %v460 = vpop.f32.mrf.mxu0
        %v461 = vadd.f32 %v364, %v460
        %v462 = vpop.f32.mrf.mxu0
        %463 = vdwg.mxu0
        %v468 = vcombine.high %v446, %v446
        %v469 = vcombine.high %v451, %v451
        %v470 = vcombine.high %v456, %v456
        %v471 = vcombine.high %v461, %v461
        %vm476 = vcmask 1043456
        %v477 = vsel %vm476, %v446, 0.0
        %v478 = vrot.slane %v477, 4
        %v479 = vadd.f32 %v477, %v478
        %v480 = vrot.slane %v479, 2
        %v481 = vadd.f32 %v479, %v480
        %v482 = vrot.slane %v481, 1
        %v483 = vadd.f32 %v481, %v482
        %v484 = vsel %vm476, %v468, 0.0
        %v485 = vrot.slane %v484, 4
        %v486 = vadd.f32 %v484, %v485
        %v487 = vrot.slane %v486, 2
        %v488 = vadd.f32 %v486, %v487
        %v489 = vrot.slane %v488, 1
        %v490 = vadd.f32 %v488, %v489
        %v491 = vsel %vm476, %v451, 0.0
        %v492 = vrot.slane %v491, 4
        %v493 = vadd.f32 %v491, %v492
        %v494 = vrot.slane %v493, 2
        %v495 = vadd.f32 %v493, %v494
        %v496 = vrot.slane %v495, 1
        %v497 = vadd.f32 %v495, %v496
        %v498 = vsel %vm476, %v469, 0.0
        %v499 = vrot.slane %v498, 4
        %v500 = vadd.f32 %v498, %v499
        %v501 = vrot.slane %v500, 2
        %v502 = vadd.f32 %v500, %v501
        %v503 = vrot.slane %v502, 1
        %v504 = vadd.f32 %v502, %v503
        %v505 = vsel %vm476, %v456, 0.0
        %v506 = vrot.slane %v505, 4
        %v507 = vadd.f32 %v505, %v506
        %v508 = vrot.slane %v507, 2
        %v509 = vadd.f32 %v507, %v508
        %v510 = vrot.slane %v509, 1
        %v511 = vadd.f32 %v509, %v510
        %v512 = vsel %vm476, %v470, 0.0
        %v513 = vrot.slane %v512, 4
        %v514 = vadd.f32 %v512, %v513
        %v515 = vrot.slane %v514, 2
        %v516 = vadd.f32 %v514, %v515
        %v517 = vrot.slane %v516, 1
        %v518 = vadd.f32 %v516, %v517
        %v519 = vsel %vm476, %v461, 0.0
        %v520 = vrot.slane %v519, 4
        %v521 = vadd.f32 %v519, %v520
        %v522 = vrot.slane %v521, 2
        %v523 = vadd.f32 %v521, %v522
        %v524 = vrot.slane %v523, 1
        %v525 = vadd.f32 %v523, %v524
        %v526 = vsel %vm476, %v471, 0.0
        %v527 = vrot.slane %v526, 4
        %v528 = vadd.f32 %v526, %v527
        %v529 = vrot.slane %v528, 2
        %v530 = vadd.f32 %v528, %v529
        %v531 = vrot.slane %v530, 1
        %v532 = vadd.f32 %v530, %v531
        %533 = vadd.xlane.f32.xlu0 %v483
        %v534 = vpop.xlane.xlu0 %533
        %535 = vadd.xlane.f32.xlu0 %v490
        %v536 = vpop.xlane.xlu0 %535
        %537 = vadd.xlane.f32.xlu0 %v497
        %v538 = vpop.xlane.xlu0 %537
        %539 = vadd.xlane.f32.xlu0 %v504
        %v540 = vpop.xlane.xlu0 %539
        %541 = vadd.xlane.f32.xlu0 %v511
        %v542 = vpop.xlane.xlu0 %541
        %543 = vadd.xlane.f32.xlu0 %v518
        %v544 = vpop.xlane.xlu0 %543
        %545 = vadd.xlane.f32.xlu0 %v525
        %v546 = vpop.xlane.xlu0 %545
        %547 = vadd.xlane.f32.xlu0 %v532
        %v548 = vpop.xlane.xlu0 %547
        %v549 = vmul.f32 %v534, 0.001953125
        %v550 = vmul.f32 %v536, 0.001953125
        %v551 = vmul.f32 %v538, 0.001953125
        %v552 = vmul.f32 %v540, 0.001953125
        %v553 = vmul.f32 %v542, 0.001953125
        %v554 = vmul.f32 %v544, 0.001953125
        %v555 = vmul.f32 %v546, 0.001953125
        %v556 = vmul.f32 %v548, 0.001953125
        %v557 = vsub.f32 %v446, %v549
        %v558 = vsub.f32 %v468, %v550
        %v559 = vsub.f32 %v451, %v551
        %v560 = vsub.f32 %v469, %v552
        %v561 = vsub.f32 %v456, %v553
        %v562 = vsub.f32 %v470, %v554
        %v563 = vsub.f32 %v461, %v555
        %v564 = vsub.f32 %v471, %v556
        %v565 = vmul.f32 %v557, %v557
        %v566 = vmul.f32 %v558, %v558
        %v567 = vmul.f32 %v559, %v559
        %v568 = vmul.f32 %v560, %v560
        %v569 = vmul.f32 %v561, %v561
        %v570 = vmul.f32 %v562, %v562
        %v571 = vmul.f32 %v563, %v563
        %v572 = vmul.f32 %v564, %v564
        %v573 = vsel %vm476, %v565, 0.0
        %v574 = vrot.slane %v573, 4
        %v575 = vadd.f32 %v573, %v574
        %v576 = vrot.slane %v575, 2
        %v577 = vadd.f32 %v575, %v576
        %v578 = vrot.slane %v577, 1
        %v579 = vadd.f32 %v577, %v578
        %v580 = vsel %vm476, %v566, 0.0
        %v581 = vrot.slane %v580, 4
        %v582 = vadd.f32 %v580, %v581
        %v583 = vrot.slane %v582, 2
        %v584 = vadd.f32 %v582, %v583
        %v585 = vrot.slane %v584, 1
        %v586 = vadd.f32 %v584, %v585
        %v587 = vsel %vm476, %v567, 0.0
        %v588 = vrot.slane %v587, 4
        %v589 = vadd.f32 %v587, %v588
        %v590 = vrot.slane %v589, 2
        %v591 = vadd.f32 %v589, %v590
        %v592 = vrot.slane %v591, 1
        %v593 = vadd.f32 %v591, %v592
        %v594 = vsel %vm476, %v568, 0.0
        %v595 = vrot.slane %v594, 4
        %v596 = vadd.f32 %v594, %v595
        %v597 = vrot.slane %v596, 2
        %v598 = vadd.f32 %v596, %v597
        %v599 = vrot.slane %v598, 1
        %v600 = vadd.f32 %v598, %v599
        %v601 = vsel %vm476, %v569, 0.0
        %v602 = vrot.slane %v601, 4
        %v603 = vadd.f32 %v601, %v602
        %v604 = vrot.slane %v603, 2
        %v605 = vadd.f32 %v603, %v604
        %v606 = vrot.slane %v605, 1
        %v607 = vadd.f32 %v605, %v606
        %v608 = vsel %vm476, %v570, 0.0
        %v609 = vrot.slane %v608, 4
        %v610 = vadd.f32 %v608, %v609
        %v611 = vrot.slane %v610, 2
        %v612 = vadd.f32 %v610, %v611
        %v613 = vrot.slane %v612, 1
        %v614 = vadd.f32 %v612, %v613
        %v615 = vsel %vm476, %v571, 0.0
        %v616 = vrot.slane %v615, 4
        %v617 = vadd.f32 %v615, %v616
        %v618 = vrot.slane %v617, 2
        %v619 = vadd.f32 %v617, %v618
        %v620 = vrot.slane %v619, 1
        %v621 = vadd.f32 %v619, %v620
        %v622 = vsel %vm476, %v572, 0.0
        %v623 = vrot.slane %v622, 4
        %v624 = vadd.f32 %v622, %v623
        %v625 = vrot.slane %v624, 2
        %v626 = vadd.f32 %v624, %v625
        %v627 = vrot.slane %v626, 1
        %v628 = vadd.f32 %v626, %v627
        %629 = vadd.xlane.f32.xlu0 %v579
        %v630 = vpop.xlane.xlu0 %629
        %631 = vadd.xlane.f32.xlu0 %v586
        %v632 = vpop.xlane.xlu0 %631
        %633 = vadd.xlane.f32.xlu0 %v593
        %v634 = vpop.xlane.xlu0 %633
        %635 = vadd.xlane.f32.xlu0 %v600
        %v636 = vpop.xlane.xlu0 %635
        %637 = vadd.xlane.f32.xlu0 %v607
        %v638 = vpop.xlane.xlu0 %637
        %639 = vadd.xlane.f32.xlu0 %v614
        %v640 = vpop.xlane.xlu0 %639
        %641 = vadd.xlane.f32.xlu0 %v621
        %v642 = vpop.xlane.xlu0 %641
        %643 = vadd.xlane.f32.xlu0 %v628
        %v644 = vpop.xlane.xlu0 %643
        %v645 = vmul.f32 %v630, 0.001953125
        %v646 = vmul.f32 %v632, 0.001953125
        %v647 = vmul.f32 %v634, 0.001953125
        %v648 = vmul.f32 %v636, 0.001953125
        %v649 = vmul.f32 %v638, 0.001953125
        %v650 = vmul.f32 %v640, 0.001953125
        %v651 = vmul.f32 %v642, 0.001953125
        %v652 = vmul.f32 %v644, 0.001953125
        %v653 = vadd.f32 %v645, 1e-05
        %v654 = vadd.f32 %v646, 1e-05
        %v655 = vadd.f32 %v647, 1e-05
        %v656 = vadd.f32 %v648, 1e-05
        %v657 = vadd.f32 %v649, 1e-05
        %v658 = vadd.f32 %v650, 1e-05
        %v659 = vadd.f32 %v651, 1e-05
        %v660 = vadd.f32 %v652, 1e-05
        %v661 = vrsqrt.pop %v653
        %v662 = vrsqrt.pop %v654
        %v663 = vrsqrt.pop %v655
        %v664 = vrsqrt.pop %v656
        %v665 = vrsqrt.pop %v657
        %v666 = vrsqrt.pop %v658
        %v667 = vrsqrt.pop %v659
        %v668 = vrsqrt.pop %v660
        %v669 = vmul.f32 %v557, %v661
        %v670 = vmul.f32 %v558, %v662
        %v671 = vmul.f32 %v559, %v663
        %v672 = vmul.f32 %v560, %v664
        %v673 = vmul.f32 %v561, %v665
        %v674 = vmul.f32 %v562, %v666
        %v675 = vmul.f32 %v563, %v667
        %v676 = vmul.f32 %v564, %v668
        %v677 = vld [vmem:[%s3] sm:$0xff]
        %v678 = vld [vmem:[%s3 + $0x8] sm:$0xff]
        %v679 = vld [vmem:[%s3 + $0x10] sm:$0xff]
        %v680 = vld [vmem:[%s3 + $0x18] sm:$0xff]
        %682 = vset.pattern.permute.xlu0 0
        %683 = vperm.xlu0 %682, %v677
        %v684 = vpop.permute.xlu0 %683
        %686 = vset.pattern.permute.xlu0 0
        %687 = vperm.xlu0 %686, %v678
        %v688 = vpop.permute.xlu0 %687
        %690 = vset.pattern.permute.xlu0 0
        %691 = vperm.xlu0 %690, %v679
        %v692 = vpop.permute.xlu0 %691
        %694 = vset.pattern.permute.xlu0 0
        %695 = vperm.xlu0 %694, %v680
        %v696 = vpop.permute.xlu0 %695
        %v698 = vunpack.c.l.s4 839922192
        %v699 = vunpack.c.0.s8 %v698
        %v700 = vlaneseq
        %v701 = vshrl.u32 %v700, 7
        %v702 = vsub.s32 %v699, %v701
        %v703 = vrot.slane %v684, %v702
        %v705 = vunpack.c.l.s4 1985246804
        %v706 = vunpack.c.0.s8 %v705
        %v707 = vlaneseq
        %v708 = vshrl.u32 %v707, 7
        %v709 = vsub.s32 %v706, %v708
        %v710 = vrot.slane %v684, %v709
        %v712 = vunpack.c.l.s4 839922192
        %v713 = vunpack.c.0.s8 %v712
        %v714 = vlaneseq
        %v715 = vshrl.u32 %v714, 7
        %v716 = vsub.s32 %v713, %v715
        %v717 = vrot.slane %v688, %v716
        %v719 = vunpack.c.l.s4 1985246804
        %v720 = vunpack.c.0.s8 %v719
        %v721 = vlaneseq
        %v722 = vshrl.u32 %v721, 7
        %v723 = vsub.s32 %v720, %v722
        %v724 = vrot.slane %v688, %v723
        %v726 = vunpack.c.l.s4 839922192
        %v727 = vunpack.c.0.s8 %v726
        %v728 = vlaneseq
        %v729 = vshrl.u32 %v728, 7
        %v730 = vsub.s32 %v727, %v729
        %v731 = vrot.slane %v692, %v730
        %v733 = vunpack.c.l.s4 1985246804
        %v734 = vunpack.c.0.s8 %v733
        %v735 = vlaneseq
        %v736 = vshrl.u32 %v735, 7
        %v737 = vsub.s32 %v734, %v736
        %v738 = vrot.slane %v692, %v737
        %v740 = vunpack.c.l.s4 839922192
        %v741 = vunpack.c.0.s8 %v740
        %v742 = vlaneseq
        %v743 = vshrl.u32 %v742, 7
        %v744 = vsub.s32 %v741, %v743
        %v745 = vrot.slane %v696, %v744
        %v747 = vunpack.c.l.s4 1985246804
        %v748 = vunpack.c.0.s8 %v747
        %v749 = vlaneseq
        %v750 = vshrl.u32 %v749, 7
        %v751 = vsub.s32 %v748, %v750
        %v752 = vrot.slane %v696, %v751
        %v761 = vmul.f32 %v669, %v703
        %v762 = vmul.f32 %v670, %v710
        %v763 = vmul.f32 %v671, %v717
        %v764 = vmul.f32 %v672, %v724
        %v765 = vmul.f32 %v673, %v731
        %v766 = vmul.f32 %v674, %v738
        %v767 = vmul.f32 %v675, %v745
        %v768 = vmul.f32 %v676, %v752
        %v769 = vld [vmem:[%s4] sm:$0xff]
        %v770 = vld [vmem:[%s4 + $0x8] sm:$0xff]
        %v771 = vld [vmem:[%s4 + $0x10] sm:$0xff]
        %v772 = vld [vmem:[%s4 + $0x18] sm:$0xff]
        %774 = vset.pattern.permute.xlu0 0
        %775 = vperm.xlu0 %774, %v769
        %v776 = vpop.permute.xlu0 %775
        %778 = vset.pattern.permute.xlu0 0
        %779 = vperm.xlu0 %778, %v770
        %v780 = vpop.permute.xlu0 %779
        %782 = vset.pattern.permute.xlu0 0
        %783 = vperm.xlu0 %782, %v771
        %v784 = vpop.permute.xlu0 %783
        %786 = vset.pattern.permute.xlu0 0
        %787 = vperm.xlu0 %786, %v772
        %v788 = vpop.permute.xlu0 %787
        %v790 = vunpack.c.l.s4 839922192
        %v791 = vunpack.c.0.s8 %v790
        %v792 = vlaneseq
        %v793 = vshrl.u32 %v792, 7
        %v794 = vsub.s32 %v791, %v793
        %v795 = vrot.slane %v776, %v794
        %v797 = vunpack.c.l.s4 1985246804
        %v798 = vunpack.c.0.s8 %v797
        %v799 = vlaneseq
        %v800 = vshrl.u32 %v799, 7
        %v801 = vsub.s32 %v798, %v800
        %v802 = vrot.slane %v776, %v801
        %v804 = vunpack.c.l.s4 839922192
        %v805 = vunpack.c.0.s8 %v804
        %v806 = vlaneseq
        %v807 = vshrl.u32 %v806, 7
        %v808 = vsub.s32 %v805, %v807
        %v809 = vrot.slane %v780, %v808
        %v811 = vunpack.c.l.s4 1985246804
        %v812 = vunpack.c.0.s8 %v811
        %v813 = vlaneseq
        %v814 = vshrl.u32 %v813, 7
        %v815 = vsub.s32 %v812, %v814
        %v816 = vrot.slane %v780, %v815
        %v818 = vunpack.c.l.s4 839922192
        %v819 = vunpack.c.0.s8 %v818
        %v820 = vlaneseq
        %v821 = vshrl.u32 %v820, 7
        %v822 = vsub.s32 %v819, %v821
        %v823 = vrot.slane %v784, %v822
        %v825 = vunpack.c.l.s4 1985246804
        %v826 = vunpack.c.0.s8 %v825
        %v827 = vlaneseq
        %v828 = vshrl.u32 %v827, 7
        %v829 = vsub.s32 %v826, %v828
        %v830 = vrot.slane %v784, %v829
        %v832 = vunpack.c.l.s4 839922192
        %v833 = vunpack.c.0.s8 %v832
        %v834 = vlaneseq
        %v835 = vshrl.u32 %v834, 7
        %v836 = vsub.s32 %v833, %v835
        %v837 = vrot.slane %v788, %v836
        %v839 = vunpack.c.l.s4 1985246804
        %v840 = vunpack.c.0.s8 %v839
        %v841 = vlaneseq
        %v842 = vshrl.u32 %v841, 7
        %v843 = vsub.s32 %v840, %v842
        %v844 = vrot.slane %v788, %v843
        %v853 = vadd.f32 %v761, %v795
        %v854 = vadd.f32 %v762, %v802
        %v855 = vadd.f32 %v763, %v809
        %v856 = vadd.f32 %v764, %v816
        %v857 = vadd.f32 %v765, %v823
        %v858 = vadd.f32 %v766, %v830
        %v859 = vadd.f32 %v767, %v837
        %v860 = vadd.f32 %v768, %v844
        %vm861 = vcmp.gt.f32.partialorder %v853, 0.0
        %vm862 = vcmp.gt.f32.partialorder %v854, 0.0
        %vm863 = vcmp.gt.f32.partialorder %v855, 0.0
        %vm864 = vcmp.gt.f32.partialorder %v856, 0.0
        %vm865 = vcmp.gt.f32.partialorder %v857, 0.0
        %vm866 = vcmp.gt.f32.partialorder %v858, 0.0
        %vm867 = vcmp.gt.f32.partialorder %v859, 0.0
        %vm868 = vcmp.gt.f32.partialorder %v860, 0.0
        %v869 = vld [vmem:[#allocation2] sm:$0x1]
        %v871 = vlaneseq
        %v872 = vshrl.u32 %v871, 7
        %v873 = vsub.s32 0, %v872
        %v874 = vrot.slane %v869, %v873
        %875 = vset.pattern.permute.xlu0 0
        %876 = vperm.xlu0 %875, %v874
        %v877 = vpop.permute.xlu0 %876
        %v879 = vmul.f32 %v853, %v877
        %v880 = vmul.f32 %v854, %v877
        %v881 = vmul.f32 %v855, %v877
        %v882 = vmul.f32 %v856, %v877
        %v883 = vmul.f32 %v857, %v877
        %v884 = vmul.f32 %v858, %v877
        %v885 = vmul.f32 %v859, %v877
        %v886 = vmul.f32 %v860, %v877
        %v887 = vsel %vm861, %v853, %v879
        %v888 = vsel %vm862, %v854, %v880
        %v889 = vsel %vm863, %v855, %v881
        %v890 = vsel %vm864, %v856, %v882
        %v891 = vsel %vm865, %v857, %v883
        %v892 = vsel %vm866, %v858, %v884
        %v893 = vsel %vm867, %v859, %v885
        %v894 = vsel %vm868, %v860, %v886
        %v903 = vcombine.low %v887, %v888
        %v904 = vcombine.low %v889, %v890
        %v905 = vcombine.low %v891, %v892
        %v906 = vcombine.low %v893, %v894
        %907 = vrot.lane.b32.xlu0 %v903, 1
        %v908 = vpop.permute.xlu0 %907
        %909 = vrot.lane.b32.xlu0 %v904, 1
        %v910 = vpop.permute.xlu0 %909
        %911 = vrot.lane.b32.xlu0 %v905, 1
        %v912 = vpop.permute.xlu0 %911
        %913 = vrot.lane.b32.xlu0 %v906, 1
        %v914 = vpop.permute.xlu0 %913
        %v919 = vadd.f32 %v272, %v908
        %v920 = vadd.f32 %v273, %v908
        %v921 = vadd.f32 %v274, %v910
        %v922 = vadd.f32 %v275, %v910
        %v923 = vadd.f32 %v276, %v912
        %v924 = vadd.f32 %v277, %v912
        %v925 = vadd.f32 %v278, %v914
        %v926 = vadd.f32 %v279, %v914
        %v927 = vmul.f32 %v919, 0.5
        %v928 = vmul.f32 %v920, 0.5
        %v929 = vmul.f32 %v921, 0.5
        %v930 = vmul.f32 %v922, 0.5
        %v931 = vmul.f32 %v923, 0.5
        %v932 = vmul.f32 %v924, 0.5
        %v933 = vmul.f32 %v925, 0.5
        %v934 = vmul.f32 %v926, 0.5
        %943 = vrot.lane.b32.xlu0 %v927, 127
        %v944 = vpop.permute.xlu0 %943
        %945 = vrot.lane.b32.xlu0 %v928, 127
        %v946 = vpop.permute.xlu0 %945
        %947 = vrot.lane.b32.xlu0 %v929, 127
        %v948 = vpop.permute.xlu0 %947
        %949 = vrot.lane.b32.xlu0 %v930, 127
        %v950 = vpop.permute.xlu0 %949
        %951 = vrot.lane.b32.xlu0 %v931, 127
        %v952 = vpop.permute.xlu0 %951
        %953 = vrot.lane.b32.xlu0 %v932, 127
        %v954 = vpop.permute.xlu0 %953
        %955 = vrot.lane.b32.xlu0 %v933, 127
        %v956 = vpop.permute.xlu0 %955
        %957 = vrot.lane.b32.xlu0 %v934, 127
        %v958 = vpop.permute.xlu0 %957
        %v959 = vsel %vm304, %v944, %v946
        %v960 = vsel %vm304, %v948, %v950
        %v961 = vsel %vm304, %v952, %v954
        %v962 = vsel %vm304, %v956, %v958
        %967 = vst [vmem:[%s271] sm:$0xff] %v959
        %968 = vst [vmem:[%s271 + $0x8] sm:$0xff] %v960
        %969 = vst [vmem:[%s271 + $0x10] sm:$0xff] %v961
        %970 = vst [vmem:[%s271 + $0x18] sm:$0xff] %v962
        %s971 = sand.u32 %s164, 1
        %s972 = scalar_lea.sflag [#allocation5], %s971
        %s973 = sand.u32 %s164, 1
        %s974 = smul.addr %s973, 32
        %s975 = scalar_lea.vmem [#allocation6], %s974
        // Predicated region
        $region49: #{tpu_custom_call.1} parent=43 // pred_check
          %p976 = pneg %p174
        $region50: #{tpu_custom_call.1} parent=43 // pred_check_branch
          %978 = sbr.rel (%p976) target = $region52
        $region51: #{tpu_custom_call.1} parent=43 // pred_region
          %s980 = ssub.s32 512, 512
          %981 = vsyncadd %s972, %s980
          %s982 = smul.addr %s25, 4
          %s983 = smul.addr %s982, 128
          %s984 = scalar_lea.hbm %s6, %s983
          %s985 = sshll.u32 %s975, 4
          %s986 = int_to_ptr.vmem [resolvable:$true] %s985
          %991 = dma.vmem_to_hbm [thread:$0]  %s986, 512, %s984, %s972, 128, 128, 8
        $region52: #{tpu_custom_call.1} parent=43 // pred_fallthru
          _
      $region44: #{tpu_custom_call.1} parent=5 // pred_fallthru
        _
      %p992 = scmp.le.s32.totalorder 2, %s20
      // Predicated region
      $region53: #{tpu_custom_call.1} parent=5 // pred_check
        %p993 = pneg %p992
      $region54: #{tpu_custom_call.1} parent=5 // pred_check_branch
        %995 = sbr.rel (%p993) target = $region56
      $region55: #{tpu_custom_call.1} parent=5 // pred_region
        %s996 = ssub.s32 %s20, 2
        // Predicated region
        $region57: #{tpu_custom_call.1} parent=55 // pred_check
          %p997 = pneg %p180
        $region58: #{tpu_custom_call.1} parent=55 // pred_check_branch
          %999 = sbr.rel (%p997) target = $region60
        $region59: #{tpu_custom_call.1} parent=55 // pred_region
          %s1000 = sand.u32 %s165, 1
          %s1001 = scalar_lea.sflag [#allocation5], %s1000
          %s1002 = sand.u32 %s165, 1
          %s1003 = smul.addr %s1002, 32
          %s1004 = scalar_lea.vmem [#allocation6], %s1003
          %1005 = dma.done %s1001, 512
        $region60: #{tpu_custom_call.1} parent=55 // pred_fallthru
          _
      $region56: #{tpu_custom_call.1} parent=5 // pred_fallthru
        _
    $region6: #{tpu_custom_call.1} parent=1 // loop_footer
      %s24 = sadd.s32 1, %s20
    $region7: #{tpu_custom_call.1} parent=1 // loop_footer_branch
      %19 = sbr.rel target = $region3
    $region8: #{tpu_custom_call.1} parent=1 // loop_exit
      _
    %1006 = vsyncpa [#allocation4], 1
    %s1007 = scalar_lea.sflag [#allocation4], 1
    %1008 = vsyncpa %s1007, 1
    %1009 = vsyncpa [#allocation5], 1
    %s1010 = scalar_lea.sflag [#allocation5], 1
    %1011 = vsyncpa %s1010, 1

</llo_original>
